<compile_context>
chip_gen: v5e
topology: v5e:2x2
jax: 0.10.0
libtpu: 0.0.40
codegen_flags: <defaults>
</compile_context>

<pallas_src>
import math

import jax
import jax.numpy as jnp
import numpy as np
from jax.experimental import pallas as pl
from jax.experimental.pallas import tpu as pltpu

_LANES = 128


# ----------------------------------------------------------------------------
# Static normalization constant K_l^m (Python floats, folded at trace time).
# ----------------------------------------------------------------------------
def _K(l, m):
    m = abs(m)
    return math.sqrt(
        (2.0 * l + 1.0) / (4.0 * math.pi)
        * math.factorial(l - m) / math.factorial(l + m)
    )


# ----------------------------------------------------------------------------
# Pallas kernel: recurrence-based real-SH expansion + tanh, fully unrolled
# over (l, m) at trace time.
# ----------------------------------------------------------------------------
def _make_shneuron_kernel(lmax):
    sqrt2 = math.sqrt(2.0)

    def kernel(coeff_ref, th_ref, ph_ref, out_ref):
        # coeff_ref: (n,)  f32 in SMEM   (n = (lmax+1)^2)
        # th_ref   : (TR, 128) f32 theta tile
        # ph_ref   : (TR, 128) f32 phi tile
        # out_ref  : (TR, 128) f32
        theta = th_ref[...]
        phi = ph_ref[...]

        ct = jnp.cos(theta)
        st = jnp.sin(theta)          # = sqrt(1 - ct^2) since theta in [0, pi]
        cp = jnp.cos(phi)
        sp = jnp.sin(phi)

        acc = jnp.zeros_like(theta)

        def add_term(acc, p_lm, l, m, cos_m, sin_m):
            # Weighted contribution of degree l, order +/-m (scalar coeffs
            # read from SMEM; all K factors are static Python floats).
            base = l * l + l                       # index of (l, m=0)
            k = _K(l, m)
            if m == 0:
                return acc + p_lm * (k * coeff_ref[base])
            s2k = sqrt2 * k
            return acc + p_lm * (cos_m * (s2k * coeff_ref[base + m])
                                 + sin_m * (s2k * coeff_ref[base - m]))

        # Running recurrences over m.
        pmm = jnp.ones_like(theta)        # P_m^m (Condon-Shortley phase)
        cos_m = jnp.ones_like(theta)      # cos(m*phi), m = 0
        sin_m = jnp.zeros_like(theta)     # sin(m*phi), m = 0

        for m in range(lmax + 1):
            if m > 0:
                # P_m^m = -(2m-1) * sin(theta) * P_{m-1}^{m-1}
                pmm = pmm * (-(2.0 * m - 1.0)) * st
                # Angle-addition recurrence for cos/sin(m*phi).
                cos_m, sin_m = (cos_m * cp - sin_m * sp,
                                sin_m * cp + cos_m * sp)

            # l = m
            p_lm2 = pmm
            acc = add_term(acc, p_lm2, m, m, cos_m, sin_m)

            if m + 1 <= lmax:
                # l = m + 1
                p_lm1 = ct * (2.0 * m + 1.0) * pmm
                acc = add_term(acc, p_lm1, m + 1, m, cos_m, sin_m)
                # upward recursion for l >= m + 2 (1/(l-m) folded statically)
                for l in range(m + 2, lmax + 1):
                    a = (2.0 * l - 1.0) / (l - m)
                    b = (l + m - 1.0) / (l - m)
                    p_l = a * ct * p_lm1 - b * p_lm2
                    acc = add_term(acc, p_l, l, m, cos_m, sin_m)
                    p_lm2, p_lm1 = p_lm1, p_l

        out_ref[...] = jnp.tanh(acc)      # gofx = tanh

    return kernel


def shneuron_forward(theta_phi, weight, bias, lmax, *, tile_rows=256):
    """theta_phi: (B, 2) f32, weight: (n, n) f32, bias: (n,) f32 -> (B,) f32."""
    n = (lmax + 1) ** 2
    assert weight.shape == (n, n) and bias.shape == (n,)
    B = theta_phi.shape[0]
    theta_phi = theta_phi.astype(jnp.float32)

    # Hoisted invariant: shcoeffs = Linear(ones(n)) = W @ 1 + b  (row sums).
    coeffs = (weight.astype(jnp.float32).sum(axis=1)
              + bias.astype(jnp.float32))                        # (n,)

    # Lane+sublane-dense batch layout: (rows, 128), rows padded to a multiple
    # of the row-tile (itself a multiple of 8 sublanes).
    rows = -(-B // _LANES)
    tr = min(tile_rows, max(8, ((rows + 7) // 8) * 8))
    rows_pad = ((rows + tr - 1) // tr) * tr
    total = rows_pad * _LANES

    theta = (jnp.zeros((total,), jnp.float32)
             .at[:B].set(theta_phi[:, 0]).reshape(rows_pad, _LANES))
    phi = (jnp.zeros((total,), jnp.float32)
           .at[:B].set(theta_phi[:, 1]).reshape(rows_pad, _LANES))

    out = pl.pallas_call(
        _make_shneuron_kernel(lmax),
        out_shape=jax.ShapeDtypeStruct((rows_pad, _LANES), jnp.float32),
        grid=(rows_pad // tr,),
        in_specs=[
            # Tiny invariant coefficient vector: whole array in SMEM.
            pl.BlockSpec(memory_space=pltpu.MemorySpace.SMEM),
            pl.BlockSpec((tr, _LANES), lambda i: (i, 0)),   # theta tile
            pl.BlockSpec((tr, _LANES), lambda i: (i, 0)),   # phi tile
        ],
        out_specs=pl.BlockSpec((tr, _LANES), lambda i: (i, 0)),
        compiler_params=pltpu.CompilerParams(
            dimension_semantics=("parallel",)),
    )(coeffs, theta, phi)

    return out.reshape(-1)[:B]


# ----------------------------------------------------------------------------
# Plain-JAX reference (independent per-term formulation, for correctness).
# ----------------------------------------------------------------------------
def _assoc_legendre(l, m, x):
    """Associated Legendre P_l^m(x) with Condon-Shortley phase, m >= 0."""
    pmm = jnp.ones_like(x)
    if m > 0:
        somx2 = jnp.sqrt(jnp.maximum((1.0 - x) * (1.0 + x), 0.0))
        fact = 1.0
        for _ in range(m):
            pmm = pmm * (-fact) * somx2
            fact += 2.0
    if l == m:
        return pmm
    pmmp1 = x * (2.0 * m + 1.0) * pmm
    if l == m + 1:
        return pmmp1
    pll = pmmp1
    for ll in range(m + 2, l + 1):
        pll = ((2.0 * ll - 1.0) * x * pmmp1 - (ll + m - 1.0) * pmm) / (ll - m)
        pmm, pmmp1 = pmmp1, pll
    return pll


def _real_sh(m, l, phi, cos_theta):
    am = abs(m)
    p = _assoc_legendre(l, am, cos_theta)
    k = _K(l, am)
    if m == 0:
        return k * p
    elif m > 0:
        return math.sqrt(2.0) * k * jnp.cos(m * phi) * p
    else:
        return math.sqrt(2.0) * k * jnp.sin(am * phi) * p


def shneuron_reference(theta_phi, weight, bias, lmax):
    theta = theta_phi[:, 0]
    phi = theta_phi[:, 1]
    coeffs = weight.sum(axis=1) + bias
    out = jnp.zeros_like(theta)
    cos_theta = jnp.cos(theta)
    idx = 0
    for l in range(lmax + 1):
        for m in range(-l, l + 1):
            out = out + _real_sh(m, l, phi, cos_theta) * coeffs[idx]
            idx += 1
    return jnp.tanh(out)


# ----------------------------------------------------------------------------
# Deterministic parameter construction (mirrors SHneuron.__init__)
# ----------------------------------------------------------------------------
def init_shneuron_params(key, lmax):
    n = (lmax + 1) ** 2
    k_w, k_b = jax.random.split(key)
    weight = jax.random.normal(k_w, (n, n), jnp.float32)        # init.normal_(std=1)
    powers = []
    for l in range(lmax + 1):
        p = 1.0 if l == 0 else float(l) ** (-2)
        powers += [p] * (2 * l + 1)
    powers = jnp.asarray(powers, jnp.float32)
    weight = weight * powers[:, None]
    bound = 1.0 / math.sqrt(n)                                   # nn.Linear bias init
    bias = jax.random.uniform(k_b, (n,), jnp.float32, -bound, bound)
    return weight, bias


if __name__ == "__main__":
    lmax = 3                       # n = (lmax+1)^2 = 16
    B = 200
    key = jax.random.PRNGKey(0)
    k_param, k_theta, k_phi = jax.random.split(key, 3)

    weight, bias = init_shneuron_params(k_param, lmax)
    theta = jax.random.uniform(k_theta, (B,), jnp.float32, 0.0, math.pi)
    phi = jax.random.uniform(k_phi, (B,), jnp.float32, 0.0, 2.0 * math.pi)
    theta_phi = jnp.stack([theta, phi], axis=1)          # (B, 2), like torch input

    out = shneuron_forward(theta_phi, weight, bias, lmax)
    out = jax.block_until_ready(out)

    ref = shneuron_reference(theta_phi, weight, bias, lmax)
    np.testing.assert_allclose(np.asarray(out), np.asarray(ref),
                               rtol=1e-4, atol=1e-4)

    print("KERNEL_OK")
</pallas_src>

<mosaic_0001>
module attributes {stable_mosaic.version = 11 : i64} {
  func.func @kernel(%arg0: i32, %arg1: memref<16xf32, #tpu.memory_space<smem>>, %arg2: memref<8x128xf32, #tpu.memory_space<vmem>>, %arg3: memref<8x128xf32, #tpu.memory_space<vmem>>, %arg4: memref<8x128xf32, #tpu.memory_space<vmem>>) attributes {dimension_semantics = [#tpu.dimension_semantics<parallel>], iteration_bounds = array<i64: 1>, scalar_prefetch = 0 : i64, scratch_operands = 0 : i64, tpu.core_type = #tpu.core_type<tc>, window_params = [{transform_indices = @transform_0, window_bounds = array<i64: 16>}, {transform_indices = @transform_1, window_bounds = array<i64: 8, 128>}, {transform_indices = @transform_2, window_bounds = array<i64: 8, 128>}, {transform_indices = @transform_3, window_bounds = array<i64: 8, 128>}]} {
    %c0 = arith.constant 0 : index
    %c0_0 = arith.constant 0 : index
    %0 = vector.load %arg2[%c0, %c0_0] : memref<8x128xf32, #tpu.memory_space<vmem>>, vector<8x128xf32>
    %c0_1 = arith.constant 0 : index
    %c0_2 = arith.constant 0 : index
    %1 = vector.load %arg3[%c0_1, %c0_2] : memref<8x128xf32, #tpu.memory_space<vmem>>, vector<8x128xf32>
    %2 = math.cos %0 : vector<8x128xf32>
    %3 = math.sin %0 : vector<8x128xf32>
    %4 = math.cos %1 : vector<8x128xf32>
    %5 = math.sin %1 : vector<8x128xf32>
    %cst = arith.constant 0.000000e+00 : f32
    %6 = vector.broadcast %cst : f32 to vector<8x128xf32>
    %cst_3 = arith.constant 1.000000e+00 : f32
    %7 = vector.broadcast %cst_3 : f32 to vector<8x128xf32>
    %cst_4 = arith.constant 1.000000e+00 : f32
    %8 = vector.broadcast %cst_4 : f32 to vector<8x128xf32>
    %cst_5 = arith.constant 0.000000e+00 : f32
    %9 = vector.broadcast %cst_5 : f32 to vector<8x128xf32>
    %c0_6 = arith.constant 0 : index
    %10 = memref.load %arg1[%c0_6] : memref<16xf32, #tpu.memory_space<smem>>
    %cst_7 = arith.constant 0.282094806 : f32
    %11 = arith.mulf %cst_7, %10 : f32
    %12 = vector.broadcast %11 : f32 to vector<8x128xf32>
    %13 = arith.mulf %7, %12 : vector<8x128xf32>
    %14 = arith.addf %6, %13 : vector<8x128xf32>
    %cst_8 = arith.constant 1.000000e+00 : f32
    %15 = vector.broadcast %cst_8 : f32 to vector<8x128xf32>
    %16 = arith.mulf %2, %15 : vector<8x128xf32>
    %17 = arith.mulf %16, %7 : vector<8x128xf32>
    %c2 = arith.constant 2 : index
    %18 = memref.load %arg1[%c2] : memref<16xf32, #tpu.memory_space<smem>>
    %cst_9 = arith.constant 0.488602519 : f32
    %19 = arith.mulf %cst_9, %18 : f32
    %20 = vector.broadcast %19 : f32 to vector<8x128xf32>
    %21 = arith.mulf %17, %20 : vector<8x128xf32>
    %22 = arith.addf %14, %21 : vector<8x128xf32>
    %cst_10 = arith.constant 1.500000e+00 : f32
    %23 = vector.broadcast %cst_10 : f32 to vector<8x128xf32>
    %24 = arith.mulf %23, %2 : vector<8x128xf32>
    %25 = arith.mulf %24, %17 : vector<8x128xf32>
    %cst_11 = arith.constant 5.000000e-01 : f32
    %26 = vector.broadcast %cst_11 : f32 to vector<8x128xf32>
    %27 = arith.mulf %26, %7 : vector<8x128xf32>
    %28 = arith.subf %25, %27 : vector<8x128xf32>
    %c6 = arith.constant 6 : index
    %29 = memref.load %arg1[%c6] : memref<16xf32, #tpu.memory_space<smem>>
    %cst_12 = arith.constant 0.63078314 : f32
    %30 = arith.mulf %cst_12, %29 : f32
    %31 = vector.broadcast %30 : f32 to vector<8x128xf32>
    %32 = arith.mulf %28, %31 : vector<8x128xf32>
    %33 = arith.addf %22, %32 : vector<8x128xf32>
    %cst_13 = arith.constant 1.66666663 : f32
    %34 = vector.broadcast %cst_13 : f32 to vector<8x128xf32>
    %35 = arith.mulf %34, %2 : vector<8x128xf32>
    %36 = arith.mulf %35, %28 : vector<8x128xf32>
    %cst_14 = arith.constant 0.666666686 : f32
    %37 = vector.broadcast %cst_14 : f32 to vector<8x128xf32>
    %38 = arith.mulf %37, %17 : vector<8x128xf32>
    %39 = arith.subf %36, %38 : vector<8x128xf32>
    %c12 = arith.constant 12 : index
    %40 = memref.load %arg1[%c12] : memref<16xf32, #tpu.memory_space<smem>>
    %cst_15 = arith.constant 0.746352672 : f32
    %41 = arith.mulf %cst_15, %40 : f32
    %42 = vector.broadcast %41 : f32 to vector<8x128xf32>
    %43 = arith.mulf %39, %42 : vector<8x128xf32>
    %44 = arith.addf %33, %43 : vector<8x128xf32>
    %cst_16 = arith.constant -1.000000e+00 : f32
    %45 = vector.broadcast %cst_16 : f32 to vector<8x128xf32>
    %46 = arith.mulf %7, %45 : vector<8x128xf32>
    %47 = arith.mulf %46, %3 : vector<8x128xf32>
    %48 = arith.mulf %8, %4 : vector<8x128xf32>
    %49 = arith.mulf %9, %5 : vector<8x128xf32>
    %50 = arith.subf %48, %49 : vector<8x128xf32>
    %51 = arith.mulf %9, %4 : vector<8x128xf32>
    %52 = arith.mulf %8, %5 : vector<8x128xf32>
    %53 = arith.addf %51, %52 : vector<8x128xf32>
    %c3 = arith.constant 3 : index
    %54 = memref.load %arg1[%c3] : memref<16xf32, #tpu.memory_space<smem>>
    %cst_17 = arith.constant 0.488602519 : f32
    %55 = arith.mulf %cst_17, %54 : f32
    %56 = vector.broadcast %55 : f32 to vector<8x128xf32>
    %57 = arith.mulf %50, %56 : vector<8x128xf32>
    %c1 = arith.constant 1 : index
    %58 = memref.load %arg1[%c1] : memref<16xf32, #tpu.memory_space<smem>>
    %cst_18 = arith.constant 0.488602519 : f32
    %59 = arith.mulf %cst_18, %58 : f32
    %60 = vector.broadcast %59 : f32 to vector<8x128xf32>
    %61 = arith.mulf %53, %60 : vector<8x128xf32>
    %62 = arith.addf %57, %61 : vector<8x128xf32>
    %63 = arith.mulf %47, %62 : vector<8x128xf32>
    %64 = arith.addf %44, %63 : vector<8x128xf32>
    %cst_19 = arith.constant 3.000000e+00 : f32
    %65 = vector.broadcast %cst_19 : f32 to vector<8x128xf32>
    %66 = arith.mulf %2, %65 : vector<8x128xf32>
    %67 = arith.mulf %66, %47 : vector<8x128xf32>
    %c7 = arith.constant 7 : index
    %68 = memref.load %arg1[%c7] : memref<16xf32, #tpu.memory_space<smem>>
    %cst_20 = arith.constant 0.3641828 : f32
    %69 = arith.mulf %cst_20, %68 : f32
    %70 = vector.broadcast %69 : f32 to vector<8x128xf32>
    %71 = arith.mulf %50, %70 : vector<8x128xf32>
    %c5 = arith.constant 5 : index
    %72 = memref.load %arg1[%c5] : memref<16xf32, #tpu.memory_space<smem>>
    %cst_21 = arith.constant 0.3641828 : f32
    %73 = arith.mulf %cst_21, %72 : f32
    %74 = vector.broadcast %73 : f32 to vector<8x128xf32>
    %75 = arith.mulf %53, %74 : vector<8x128xf32>
    %76 = arith.addf %71, %75 : vector<8x128xf32>
    %77 = arith.mulf %67, %76 : vector<8x128xf32>
    %78 = arith.addf %64, %77 : vector<8x128xf32>
    %cst_22 = arith.constant 2.500000e+00 : f32
    %79 = vector.broadcast %cst_22 : f32 to vector<8x128xf32>
    %80 = arith.mulf %79, %2 : vector<8x128xf32>
    %81 = arith.mulf %80, %67 : vector<8x128xf32>
    %cst_23 = arith.constant 1.500000e+00 : f32
    %82 = vector.broadcast %cst_23 : f32 to vector<8x128xf32>
    %83 = arith.mulf %82, %47 : vector<8x128xf32>
    %84 = arith.subf %81, %83 : vector<8x128xf32>
    %c13 = arith.constant 13 : index
    %85 = memref.load %arg1[%c13] : memref<16xf32, #tpu.memory_space<smem>>
    %cst_24 = arith.constant 0.304697186 : f32
    %86 = arith.mulf %cst_24, %85 : f32
    %87 = vector.broadcast %86 : f32 to vector<8x128xf32>
    %88 = arith.mulf %50, %87 : vector<8x128xf32>
    %c11 = arith.constant 11 : index
    %89 = memref.load %arg1[%c11] : memref<16xf32, #tpu.memory_space<smem>>
    %cst_25 = arith.constant 0.304697186 : f32
    %90 = arith.mulf %cst_25, %89 : f32
    %91 = vector.broadcast %90 : f32 to vector<8x128xf32>
    %92 = arith.mulf %53, %91 : vector<8x128xf32>
    %93 = arith.addf %88, %92 : vector<8x128xf32>
    %94 = arith.mulf %84, %93 : vector<8x128xf32>
    %95 = arith.addf %78, %94 : vector<8x128xf32>
    %cst_26 = arith.constant -3.000000e+00 : f32
    %96 = vector.broadcast %cst_26 : f32 to vector<8x128xf32>
    %97 = arith.mulf %47, %96 : vector<8x128xf32>
    %98 = arith.mulf %97, %3 : vector<8x128xf32>
    %99 = arith.mulf %50, %4 : vector<8x128xf32>
    %100 = arith.mulf %53, %5 : vector<8x128xf32>
    %101 = arith.subf %99, %100 : vector<8x128xf32>
    %102 = arith.mulf %53, %4 : vector<8x128xf32>
    %103 = arith.mulf %50, %5 : vector<8x128xf32>
    %104 = arith.addf %102, %103 : vector<8x128xf32>
    %c8 = arith.constant 8 : index
    %105 = memref.load %arg1[%c8] : memref<16xf32, #tpu.memory_space<smem>>
    %cst_27 = arith.constant 0.1820914 : f32
    %106 = arith.mulf %cst_27, %105 : f32
    %107 = vector.broadcast %106 : f32 to vector<8x128xf32>
    %108 = arith.mulf %101, %107 : vector<8x128xf32>
    %c4 = arith.constant 4 : index
    %109 = memref.load %arg1[%c4] : memref<16xf32, #tpu.memory_space<smem>>
    %cst_28 = arith.constant 0.1820914 : f32
    %110 = arith.mulf %cst_28, %109 : f32
    %111 = vector.broadcast %110 : f32 to vector<8x128xf32>
    %112 = arith.mulf %104, %111 : vector<8x128xf32>
    %113 = arith.addf %108, %112 : vector<8x128xf32>
    %114 = arith.mulf %98, %113 : vector<8x128xf32>
    %115 = arith.addf %95, %114 : vector<8x128xf32>
    %cst_29 = arith.constant 5.000000e+00 : f32
    %116 = vector.broadcast %cst_29 : f32 to vector<8x128xf32>
    %117 = arith.mulf %2, %116 : vector<8x128xf32>
    %118 = arith.mulf %117, %98 : vector<8x128xf32>
    %c14 = arith.constant 14 : index
    %119 = memref.load %arg1[%c14] : memref<16xf32, #tpu.memory_space<smem>>
    %cst_30 = arith.constant 0.0963537171 : f32
    %120 = arith.mulf %cst_30, %119 : f32
    %121 = vector.broadcast %120 : f32 to vector<8x128xf32>
    %122 = arith.mulf %101, %121 : vector<8x128xf32>
    %c10 = arith.constant 10 : index
    %123 = memref.load %arg1[%c10] : memref<16xf32, #tpu.memory_space<smem>>
    %cst_31 = arith.constant 0.0963537171 : f32
    %124 = arith.mulf %cst_31, %123 : f32
    %125 = vector.broadcast %124 : f32 to vector<8x128xf32>
    %126 = arith.mulf %104, %125 : vector<8x128xf32>
    %127 = arith.addf %122, %126 : vector<8x128xf32>
    %128 = arith.mulf %118, %127 : vector<8x128xf32>
    %129 = arith.addf %115, %128 : vector<8x128xf32>
    %cst_32 = arith.constant -5.000000e+00 : f32
    %130 = vector.broadcast %cst_32 : f32 to vector<8x128xf32>
    %131 = arith.mulf %98, %130 : vector<8x128xf32>
    %132 = arith.mulf %131, %3 : vector<8x128xf32>
    %133 = arith.mulf %101, %4 : vector<8x128xf32>
    %134 = arith.mulf %104, %5 : vector<8x128xf32>
    %135 = arith.subf %133, %134 : vector<8x128xf32>
    %136 = arith.mulf %104, %4 : vector<8x128xf32>
    %137 = arith.mulf %101, %5 : vector<8x128xf32>
    %138 = arith.addf %136, %137 : vector<8x128xf32>
    %c15 = arith.constant 15 : index
    %139 = memref.load %arg1[%c15] : memref<16xf32, #tpu.memory_space<smem>>
    %cst_33 = arith.constant 0.0393362381 : f32
    %140 = arith.mulf %cst_33, %139 : f32
    %141 = vector.broadcast %140 : f32 to vector<8x128xf32>
    %142 = arith.mulf %135, %141 : vector<8x128xf32>
    %c9 = arith.constant 9 : index
    %143 = memref.load %arg1[%c9] : memref<16xf32, #tpu.memory_space<smem>>
    %cst_34 = arith.constant 0.0393362381 : f32
    %144 = arith.mulf %cst_34, %143 : f32
    %145 = vector.broadcast %144 : f32 to vector<8x128xf32>
    %146 = arith.mulf %138, %145 : vector<8x128xf32>
    %147 = arith.addf %142, %146 : vector<8x128xf32>
    %148 = arith.mulf %132, %147 : vector<8x128xf32>
    %149 = arith.addf %129, %148 : vector<8x128xf32>
    %150 = math.tanh %149 : vector<8x128xf32>
    %c0_35 = arith.constant 0 : index
    %c0_36 = arith.constant 0 : index
    %151 = vector.load %arg4[%c0_35, %c0_36] : memref<8x128xf32, #tpu.memory_space<vmem>>, vector<8x128xf32>
    tpu.vector_store %arg4[%c0_35, %c0_36], %150 {strides = array<i32>} : memref<8x128xf32, #tpu.memory_space<vmem>>, vector<8x128xf32>,
    return
  }
  func.func @transform_0(%arg0: i32) -> i32 {
    %c0_i32 = arith.constant 0 : i32
    %c0_i32_0 = arith.constant 0 : i32
    return %c0_i32 : i32
  }
  func.func @transform_1(%arg0: i32) -> (i32, i32) {
    %c0_i32 = arith.constant 0 : i32
    %c0_i32_0 = arith.constant 0 : i32
    return %arg0, %c0_i32 : i32, i32
  }
  func.func @transform_2(%arg0: i32) -> (i32, i32) {
    %c0_i32 = arith.constant 0 : i32
    %c0_i32_0 = arith.constant 0 : i32
    return %arg0, %c0_i32 : i32, i32
  }
  func.func @transform_3(%arg0: i32) -> (i32, i32) {
    %c0_i32 = arith.constant 0 : i32
    %c0_i32_0 = arith.constant 0 : i32
    return %arg0, %c0_i32 : i32, i32
  }
}

</mosaic_0001>

<llo_original>
// kernel: tpu_custom_call.1
$region0: #{tpu_custom_call.1}
  #allocation0 [shape = 'u32[]', space=smem, size = 0x4, offset = 0x4, fixed_abs, tag = 'smem constant byte address 0x4 - core index']
  #allocation1 [shape = 'u32[72,128]{1,0:T(1,128)}', space=vmem, size = 0x9000, scoped, tag = 'internal scratch']
  %s0 = inlined_call_operand.hbm [shape: f32[16], index: 0, kind: input, shape index: {}]
  %s1 = inlined_call_operand.hbm [shape: f32[8,128], index: 1, kind: input, shape index: {}]
  %s2 = inlined_call_operand.hbm [shape: f32[8,128], index: 2, kind: input, shape index: {}]
  %s3 = inlined_call_operand.hbm [shape: f32[8,128], index: 3, kind: output, shape index: {}]
  %s4 = sld [smem:[#allocation0]]
  $region34: #{tpu_custom_call.1} parent=0
    _
  %s6 = ssub.s32 1, %s4
  %s7 = scalar_select 0, %s6, %s4
  $region1: #{tpu_custom_call.1} parent=0
    #allocation2 [shape = 'u8[512]{0}', space=smem, size = 0x200, scoped, tag = 'input window, operand 0, single buffered']
    #allocation3 [shape = 's32[1]{0}', space=sflag, size = 0x4, scoped, tag = 'scoped memory for tpu_custom_call.1']
    #allocation4 [shape = 's32[1]{0}', space=sflag, size = 0x4, scoped, tag = 'scoped memory for tpu_custom_call.1']
    #allocation5 [shape = 's32[1]{0}', space=sflag, size = 0x4, scoped, tag = 'scoped memory for tpu_custom_call.1']
    #allocation6 [shape = 'u8[4096]{0}', space=vmem, size = 0x1000, scoped, tag = 'input window, operand 1, single buffered']
    #allocation7 [shape = 'u8[4096]{0}', space=vmem, size = 0x1000, scoped, tag = 'input window, operand 2, single buffered']
    #allocation8 [shape = 's32[1]{0}', space=sflag, size = 0x4, scoped, tag = 'scoped memory for tpu_custom_call.1']
    #allocation9 [shape = 'u8[4096]{0}', space=vmem, size = 0x1000, scoped, tag = 'output window, operand 0, single buffered']
    %8 = vsyncpa [#allocation5], 0
    %9 = vsyncpa [#allocation3], 0
    %10 = vsyncpa [#allocation8], 0
    %11 = vsyncpa [#allocation4], 0
    // Predicated region
    $region2: #{tpu_custom_call.1} parent=1 // pred_check
      _
    $region3: #{tpu_custom_call.1} parent=1 // pred_check_branch
      %13 = sbr.rel (0) target = $region5
    $region4: #{tpu_custom_call.1} parent=1 // pred_region
      %15 = vsyncadd [#allocation5], 0
      %s17 = sshll.u32 %s0, 4
      %s18 = int_to_ptr.hbm [resolvable:$true] %s17
      %20 = dma.hbm_to_smem %s18, 16, [#allocation2], [#allocation5]
    $region5: #{tpu_custom_call.1} parent=1 // pred_fallthru
      _
    // Predicated region
    $region6: #{tpu_custom_call.1} parent=1 // pred_check
      _
    $region7: #{tpu_custom_call.1} parent=1 // pred_check_branch
      %22 = sbr.rel (0) target = $region9
    $region8: #{tpu_custom_call.1} parent=1 // pred_region
      %24 = vsyncadd [#allocation3], 0
      %s26 = sshll.u32 %s1, 4
      %s27 = int_to_ptr.hbm [resolvable:$true] %s26
      %s28 = sshll.u32 [#allocation6], 4
      %s29 = int_to_ptr.vmem [resolvable:$true] %s28
      %31 = dma.hbm_to_vmem [thread:$0]  %s27, 128, %s29, [#allocation3]
    $region9: #{tpu_custom_call.1} parent=1 // pred_fallthru
      _
    // Predicated region
    $region10: #{tpu_custom_call.1} parent=1 // pred_check
      _
    $region11: #{tpu_custom_call.1} parent=1 // pred_check_branch
      %33 = sbr.rel (0) target = $region13
    $region12: #{tpu_custom_call.1} parent=1 // pred_region
      %35 = vsyncadd [#allocation8], 0
      %s37 = sshll.u32 %s2, 4
      %s38 = int_to_ptr.hbm [resolvable:$true] %s37
      %s39 = sshll.u32 [#allocation7], 4
      %s40 = int_to_ptr.vmem [resolvable:$true] %s39
      %42 = dma.hbm_to_vmem [thread:$0]  %s38, 128, %s40, [#allocation8]
    $region13: #{tpu_custom_call.1} parent=1 // pred_fallthru
      _
    // Predicated region
    $region14: #{tpu_custom_call.1} parent=1 // pred_check
      _
    $region15: #{tpu_custom_call.1} parent=1 // pred_check_branch
      %44 = sbr.rel (0) target = $region17
    $region16: #{tpu_custom_call.1} parent=1 // pred_region
      %46 = dma.done [#allocation5], 16
    $region17: #{tpu_custom_call.1} parent=1 // pred_fallthru
      _
    // Predicated region
    $region18: #{tpu_custom_call.1} parent=1 // pred_check
      _
    $region19: #{tpu_custom_call.1} parent=1 // pred_check_branch
      %48 = sbr.rel (0) target = $region21
    $region20: #{tpu_custom_call.1} parent=1 // pred_region
      %50 = dma.done [#allocation3], 128
    $region21: #{tpu_custom_call.1} parent=1 // pred_fallthru
      _
    // Predicated region
    $region22: #{tpu_custom_call.1} parent=1 // pred_check
      _
    $region23: #{tpu_custom_call.1} parent=1 // pred_check_branch
      %52 = sbr.rel (0) target = $region25
    $region24: #{tpu_custom_call.1} parent=1 // pred_region
      %54 = dma.done [#allocation8], 128
    $region25: #{tpu_custom_call.1} parent=1 // pred_fallthru
      _
    %55 = sfence
    %v56 = vld [vmem:[#allocation6] sm:$0xff]
    %v57 = vld [vmem:[#allocation7] sm:$0xff]
    %v58 = vand.u32 2147483647, %v56
    %vm59 = vcmp.le.f32.partialorder %v58, 0.7853982
    %vm60 = vcmp.lt.s32.totalorder %v56, 0
    %v61 = vand.u32 %v56, 2139095040
    %v62 = vshrl.u32 %v61, 23
    %v63 = vsub.s32 %v62, 127
    %v64 = vand.u32 2147483647, %v56
    %v65 = vand.u32 %v64, 8388607
    %v66 = vor.u32 %v65, 8388608
    %v67 = vsub.s32 0, %v66
    %v68 = vadd.s32 %v63, 1
    %vm69 = vcmp.gt.s32.totalorder %v68, 0
    %v70 = vsel %vm69, %v68, 0
    %v71 = vshrl.u32 %v70, 5
    %v72 = vand.u32 %v70, 31
    %v73 = vsub.s32 32, %v72
    %v74 = vshrl.u32 683565275, %v73
    %v75 = vshll.u32 683565275, %v72
    %v76 = vshrl.u32 2475754826, %v73
    %v77 = vor.u32 %v75, %v76
    %v78 = vshll.u32 2475754826, %v72
    %v79 = vshrl.u32 2131351028, %v73
    %v80 = vor.u32 %v78, %v79
    %v81 = vshll.u32 2131351028, %v72
    %v82 = vshrl.u32 2102212464, %v73
    %v83 = vor.u32 %v81, %v82
    %v84 = vshll.u32 2102212464, %v72
    %v85 = vshrl.u32 920167782, %v73
    %v86 = vor.u32 %v84, %v85
    %v87 = vshll.u32 920167782, %v72
    %v88 = vshrl.u32 1326507024, %v73
    %v89 = vor.u32 %v87, %v88
    %vm90 = vcmp.lt.s32.totalorder %v71, 1
    %vm91 = vcmp.lt.s32.totalorder %v71, 2
    %vm92 = vcmp.lt.s32.totalorder %v71, 3
    %vm93 = vcmp.lt.s32.totalorder %v71, 4
    %v94 = vsel %vm90, %v74, %v77
    %v95 = vsel %vm93, %v83, 2102212464
    %v96 = vsel %vm92, %v80, %v95
    %v97 = vsel %vm91, %v94, %v96
    %v98 = vsel %vm90, %v77, %v80
    %v99 = vsel %vm93, %v86, 920167782
    %v100 = vsel %vm92, %v83, %v99
    %v101 = vsel %vm91, %v98, %v100
    %v102 = vsel %vm90, %v80, %v83
    %v103 = vsel %vm93, %v89, 1326507024
    %v104 = vsel %vm92, %v86, %v103
    %v105 = vsel %vm91, %v102, %v104
    %v106 = vshll.u32 %v66, 8
    %v107 = vand.u32 %v106, 65535
    %v108 = vshrl.u32 %v106, 16
    %v109 = vand.u32 %v105, 65535
    %v110 = vshrl.u32 %v105, 16
    %v111 = vmul.u32 %v107, %v109
    %v112 = vmul.u32 %v107, %v110
    %v113 = vmul.u32 %v108, %v109
    %v114 = vmul.u32 %v108, %v110
    %v115 = vshll.u32 %v112, 16
    %v116 = vshrl.u32 %v112, 16
    %v117 = vshll.u32 %v113, 16
    %v118 = vshrl.u32 %v113, 16
    %vm119 = vc.u32 %v111, %v115
    %v120 = vsel %vm119, 1, 0
    %v121 = vadd.s32 %v111, %v115
    %v122 = vadd.s32 %v114, %v120
    %vm123 = vc.u32 %v121, %v117
    %v124 = vsel %vm123, 1, 0
    %v125 = vadd.s32 %v121, %v117
    %v126 = vadd.s32 %v122, %v124
    %v127 = vadd.s32 %v126, %v116
    %v128 = vadd.s32 %v127, %v118
    %v129 = vand.u32 %v106, 65535
    %v130 = vshrl.u32 %v106, 16
    %v131 = vand.u32 %v101, 65535
    %v132 = vshrl.u32 %v101, 16
    %v133 = vmul.u32 %v129, %v131
    %v134 = vmul.u32 %v129, %v132
    %v135 = vmul.u32 %v130, %v131
    %v136 = vmul.u32 %v130, %v132
    %v137 = vshll.u32 %v134, 16
    %v138 = vshrl.u32 %v134, 16
    %v139 = vshll.u32 %v135, 16
    %v140 = vshrl.u32 %v135, 16
    %vm141 = vc.u32 %v133, %v137
    %v142 = vsel %vm141, 1, 0
    %v143 = vadd.s32 %v133, %v137
    %v144 = vadd.s32 %v136, %v142
    %vm145 = vc.u32 %v143, %v139
    %v146 = vsel %vm145, 1, 0
    %v147 = vadd.s32 %v143, %v139
    %v148 = vadd.s32 %v144, %v146
    %v149 = vadd.s32 %v148, %v138
    %v150 = vadd.s32 %v149, %v140
    %v151 = vmul.u32 %v106, %v97
    %v152 = vadd.s32 %v128, %v147
    %vm153 = vc.u32 %v128, %v147
    %v154 = vadd.s32 %v150, 1
    %v155 = vsel %vm153, %v154, %v150
    %v156 = vadd.s32 %v151, %v155
    %v157 = vadd.s32 %v156, 536870912
    %v158 = vshrl.u32 %v157, 30
    %v159 = vshll.u32 %v158, 30
    %v160 = vsub.s32 %v156, %v159
    %vm161 = vcmp.lt.s32.totalorder %v160, 0
    %v162 = vsub.s32 0, %v160
    %v163 = vsel %vm161, %v162, %v160
    %v164 = vclz %v163
    %v165 = vsub.s32 %v164, 2
    %vm166 = vcmp.gt.s32.totalorder 0, %v165
    %v167 = vsel %vm166, 0, %v165
    %v168 = vsub.s32 32, %v167
    %v169 = vshll.u32 %v160, %v167
    %v170 = vshrl.u32 %v152, %v168
    %v171 = vor.u32 %v169, %v170
    %v172 = vsub.s32 4294967266, %v167
    %v173 = vadd.s32 %v172, 127
    %v174 = vshll.u32 %v173, 23
    %v175 = vor.u32 4788187, %v174
    %v176 = vand.u32 2147483647, %v175
    %v178 = vcvt.s32.f32 %v171
    %v179 = vmul.f32 %v178, %v176
    %v180 = vxor.u32 %v179, 2147483648
    %v181 = vsel %vm60, %v180, %v179
    %v182 = vsub.s32 4, %v158
    %v183 = vsel %vm60, %v182, %v158
    %v184 = vsel %vm59, %v56, %v181
    %v185 = vsel %vm59, 0, %v183
    %v186 = vmul.f32 %v184, %v184
    %v187 = vmul.f32 %v186, -0.001358992
    %v188 = vadd.f32 %v187, 0.041655596
    %v189 = vmul.f32 %v186, %v188
    %v190 = vadd.f32 %v189, -0.4999988
    %v191 = vmul.f32 %v186, %v190
    %v192 = vadd.f32 1.0, %v191
    %v193 = vmul.f32 %v184, %v184
    %v194 = vmul.f32 %v193, -0.00019511016
    %v195 = vadd.f32 %v194, 0.008332121
    %v196 = vmul.f32 %v193, %v195
    %v197 = vadd.f32 %v196, -0.16666654
    %v198 = vmul.f32 %v193, %v197
    %v199 = vadd.f32 %v198, 1.0
    %v200 = vmul.f32 %v199, %v184
    %vm201 = vweird.f32 %v56
    %v202 = vand.u32 %v185, 3
    %vm203 = vcmp.lt.s32.totalorder %v202, 2
    %vm204 = vcmp.eq.s32.totalorder %v202, 0
    %v205 = vxor.u32 %v200, 2147483648
    %v206 = vsel %vm204, %v192, %v205
    %vm207 = vcmp.eq.s32.totalorder %v202, 2
    %v208 = vxor.u32 %v192, 2147483648
    %v209 = vsel %vm207, %v208, %v200
    %v210 = vsel %vm203, %v206, %v209
    %v211 = vsel %vm201, nan, %v210
    %v212 = vand.u32 2147483647, %v56
    %vm213 = vcmp.le.f32.partialorder %v212, 0.7853982
    %vm214 = vcmp.lt.s32.totalorder %v56, 0
    %v215 = vand.u32 %v56, 2139095040
    %v216 = vshrl.u32 %v215, 23
    %v217 = vsub.s32 %v216, 127
    %v218 = vand.u32 2147483647, %v56
    %v219 = vand.u32 %v218, 8388607
    %v220 = vor.u32 %v219, 8388608
    %v221 = vsub.s32 0, %v220
    %v222 = vadd.s32 %v217, 1
    %vm223 = vcmp.gt.s32.totalorder %v222, 0
    %v224 = vsel %vm223, %v222, 0
    %v225 = vshrl.u32 %v224, 5
    %v226 = vand.u32 %v224, 31
    %v227 = vsub.s32 32, %v226
    %v228 = vshrl.u32 683565275, %v227
    %v229 = vshll.u32 683565275, %v226
    %v230 = vshrl.u32 2475754826, %v227
    %v231 = vor.u32 %v229, %v230
    %v232 = vshll.u32 2475754826, %v226
    %v233 = vshrl.u32 2131351028, %v227
    %v234 = vor.u32 %v232, %v233
    %v235 = vshll.u32 2131351028, %v226
    %v236 = vshrl.u32 2102212464, %v227
    %v237 = vor.u32 %v235, %v236
    %v238 = vshll.u32 2102212464, %v226
    %v239 = vshrl.u32 920167782, %v227
    %v240 = vor.u32 %v238, %v239
    %v241 = vshll.u32 920167782, %v226
    %v242 = vshrl.u32 1326507024, %v227
    %v243 = vor.u32 %v241, %v242
    %vm244 = vcmp.lt.s32.totalorder %v225, 1
    %vm245 = vcmp.lt.s32.totalorder %v225, 2
    %vm246 = vcmp.lt.s32.totalorder %v225, 3
    %vm247 = vcmp.lt.s32.totalorder %v225, 4
    %v248 = vsel %vm244, %v228, %v231
    %v249 = vsel %vm247, %v237, 2102212464
    %v250 = vsel %vm246, %v234, %v249
    %v251 = vsel %vm245, %v248, %v250
    %v252 = vsel %vm244, %v231, %v234
    %v253 = vsel %vm247, %v240, 920167782
    %v254 = vsel %vm246, %v237, %v253
    %v255 = vsel %vm245, %v252, %v254
    %v256 = vsel %vm244, %v234, %v237
    %v257 = vsel %vm247, %v243, 1326507024
    %v258 = vsel %vm246, %v240, %v257
    %v259 = vsel %vm245, %v256, %v258
    %v260 = vshll.u32 %v220, 8
    %v261 = vand.u32 %v260, 65535
    %v262 = vshrl.u32 %v260, 16
    %v263 = vand.u32 %v259, 65535
    %v264 = vshrl.u32 %v259, 16
    %v265 = vmul.u32 %v261, %v263
    %v266 = vmul.u32 %v261, %v264
    %v267 = vmul.u32 %v262, %v263
    %v268 = vmul.u32 %v262, %v264
    %v269 = vshll.u32 %v266, 16
    %v270 = vshrl.u32 %v266, 16
    %v271 = vshll.u32 %v267, 16
    %v272 = vshrl.u32 %v267, 16
    %vm273 = vc.u32 %v265, %v269
    %v274 = vsel %vm273, 1, 0
    %v275 = vadd.s32 %v265, %v269
    %v276 = vadd.s32 %v268, %v274
    %vm277 = vc.u32 %v275, %v271
    %v278 = vsel %vm277, 1, 0
    %v279 = vadd.s32 %v275, %v271
    %v280 = vadd.s32 %v276, %v278
    %v281 = vadd.s32 %v280, %v270
    %v282 = vadd.s32 %v281, %v272
    %v283 = vand.u32 %v260, 65535
    %v284 = vshrl.u32 %v260, 16
    %v285 = vand.u32 %v255, 65535
    %v286 = vshrl.u32 %v255, 16
    %v287 = vmul.u32 %v283, %v285
    %v288 = vmul.u32 %v283, %v286
    %v289 = vmul.u32 %v284, %v285
    %v290 = vmul.u32 %v284, %v286
    %v291 = vshll.u32 %v288, 16
    %v292 = vshrl.u32 %v288, 16
    %v293 = vshll.u32 %v289, 16
    %v294 = vshrl.u32 %v289, 16
    %vm295 = vc.u32 %v287, %v291
    %v296 = vsel %vm295, 1, 0
    %v297 = vadd.s32 %v287, %v291
    %v298 = vadd.s32 %v290, %v296
    %vm299 = vc.u32 %v297, %v293
    %v300 = vsel %vm299, 1, 0
    %v301 = vadd.s32 %v297, %v293
    %v302 = vadd.s32 %v298, %v300
    %v303 = vadd.s32 %v302, %v292
    %v304 = vadd.s32 %v303, %v294
    %v305 = vmul.u32 %v260, %v251
    %v306 = vadd.s32 %v282, %v301
    %vm307 = vc.u32 %v282, %v301
    %v308 = vadd.s32 %v304, 1
    %v309 = vsel %vm307, %v308, %v304
    %v310 = vadd.s32 %v305, %v309
    %v311 = vadd.s32 %v310, 536870912
    %v312 = vshrl.u32 %v311, 30
    %v313 = vshll.u32 %v312, 30
    %v314 = vsub.s32 %v310, %v313
    %vm315 = vcmp.lt.s32.totalorder %v314, 0
    %v316 = vsub.s32 0, %v314
    %v317 = vsel %vm315, %v316, %v314
    %v318 = vclz %v317
    %v319 = vsub.s32 %v318, 2
    %vm320 = vcmp.gt.s32.totalorder 0, %v319
    %v321 = vsel %vm320, 0, %v319
    %v322 = vsub.s32 32, %v321
    %v323 = vshll.u32 %v314, %v321
    %v324 = vshrl.u32 %v306, %v322
    %v325 = vor.u32 %v323, %v324
    %v326 = vsub.s32 4294967266, %v321
    %v327 = vadd.s32 %v326, 127
    %v328 = vshll.u32 %v327, 23
    %v329 = vor.u32 4788187, %v328
    %v330 = vand.u32 2147483647, %v329
    %v332 = vcvt.s32.f32 %v325
    %v333 = vmul.f32 %v332, %v330
    %v334 = vxor.u32 %v333, 2147483648
    %v335 = vsel %vm214, %v334, %v333
    %v336 = vsub.s32 4, %v312
    %v337 = vsel %vm214, %v336, %v312
    %v338 = vsel %vm213, %v56, %v335
    %v339 = vsel %vm213, 0, %v337
    %v340 = vmul.f32 %v338, %v338
    %v341 = vmul.f32 %v340, -0.001358992
    %v342 = vadd.f32 %v341, 0.041655596
    %v343 = vmul.f32 %v340, %v342
    %v344 = vadd.f32 %v343, -0.4999988
    %v345 = vmul.f32 %v340, %v344
    %v346 = vadd.f32 1.0, %v345
    %v347 = vmul.f32 %v338, %v338
    %v348 = vmul.f32 %v347, -0.00019511016
    %v349 = vadd.f32 %v348, 0.008332121
    %v350 = vmul.f32 %v347, %v349
    %v351 = vadd.f32 %v350, -0.16666654
    %v352 = vmul.f32 %v347, %v351
    %v353 = vadd.f32 %v352, 1.0
    %v354 = vmul.f32 %v353, %v338
    %vm355 = vweird.f32 %v56
    %v356 = vadd.s32 %v339, 3
    %v357 = vand.u32 %v356, 3
    %vm358 = vcmp.lt.s32.totalorder %v357, 2
    %vm359 = vcmp.eq.s32.totalorder %v357, 0
    %v360 = vxor.u32 %v354, 2147483648
    %v361 = vsel %vm359, %v346, %v360
    %vm362 = vcmp.eq.s32.totalorder %v357, 2
    %v363 = vxor.u32 %v346, 2147483648
    %v364 = vsel %vm362, %v363, %v354
    %v365 = vsel %vm358, %v361, %v364
    %v366 = vsel %vm355, nan, %v365
    %v367 = vand.u32 2147483647, %v57
    %vm368 = vcmp.le.f32.partialorder %v367, 0.7853982
    %vm369 = vcmp.lt.s32.totalorder %v57, 0
    %v370 = vand.u32 %v57, 2139095040
    %v371 = vshrl.u32 %v370, 23
    %v372 = vsub.s32 %v371, 127
    %v373 = vand.u32 2147483647, %v57
    %v374 = vand.u32 %v373, 8388607
    %v375 = vor.u32 %v374, 8388608
    %v376 = vsub.s32 0, %v375
    %v377 = vadd.s32 %v372, 1
    %vm378 = vcmp.gt.s32.totalorder %v377, 0
    %v379 = vsel %vm378, %v377, 0
    %v380 = vshrl.u32 %v379, 5
    %v381 = vand.u32 %v379, 31
    %v382 = vsub.s32 32, %v381
    %v383 = vshrl.u32 683565275, %v382
    %v384 = vshll.u32 683565275, %v381
    %v385 = vshrl.u32 2475754826, %v382
    %v386 = vor.u32 %v384, %v385
    %v387 = vshll.u32 2475754826, %v381
    %v388 = vshrl.u32 2131351028, %v382
    %v389 = vor.u32 %v387, %v388
    %v390 = vshll.u32 2131351028, %v381
    %v391 = vshrl.u32 2102212464, %v382
    %v392 = vor.u32 %v390, %v391
    %v393 = vshll.u32 2102212464, %v381
    %v394 = vshrl.u32 920167782, %v382
    %v395 = vor.u32 %v393, %v394
    %v396 = vshll.u32 920167782, %v381
    %v397 = vshrl.u32 1326507024, %v382
    %v398 = vor.u32 %v396, %v397
    %vm399 = vcmp.lt.s32.totalorder %v380, 1
    %vm400 = vcmp.lt.s32.totalorder %v380, 2
    %vm401 = vcmp.lt.s32.totalorder %v380, 3
    %vm402 = vcmp.lt.s32.totalorder %v380, 4
    %v403 = vsel %vm399, %v383, %v386
    %v404 = vsel %vm402, %v392, 2102212464
    %v405 = vsel %vm401, %v389, %v404
    %v406 = vsel %vm400, %v403, %v405
    %v407 = vsel %vm399, %v386, %v389
    %v408 = vsel %vm402, %v395, 920167782
    %v409 = vsel %vm401, %v392, %v408
    %v410 = vsel %vm400, %v407, %v409
    %v411 = vsel %vm399, %v389, %v392
    %v412 = vsel %vm402, %v398, 1326507024
    %v413 = vsel %vm401, %v395, %v412
    %v414 = vsel %vm400, %v411, %v413
    %v415 = vshll.u32 %v375, 8
    %v416 = vand.u32 %v415, 65535
    %v417 = vshrl.u32 %v415, 16
    %v418 = vand.u32 %v414, 65535
    %v419 = vshrl.u32 %v414, 16
    %v420 = vmul.u32 %v416, %v418
    %v421 = vmul.u32 %v416, %v419
    %v422 = vmul.u32 %v417, %v418
    %v423 = vmul.u32 %v417, %v419
    %v424 = vshll.u32 %v421, 16
    %v425 = vshrl.u32 %v421, 16
    %v426 = vshll.u32 %v422, 16
    %v427 = vshrl.u32 %v422, 16
    %vm428 = vc.u32 %v420, %v424
    %v429 = vsel %vm428, 1, 0
    %v430 = vadd.s32 %v420, %v424
    %v431 = vadd.s32 %v423, %v429
    %vm432 = vc.u32 %v430, %v426
    %v433 = vsel %vm432, 1, 0
    %v434 = vadd.s32 %v430, %v426
    %v435 = vadd.s32 %v431, %v433
    %v436 = vadd.s32 %v435, %v425
    %v437 = vadd.s32 %v436, %v427
    %v438 = vand.u32 %v415, 65535
    %v439 = vshrl.u32 %v415, 16
    %v440 = vand.u32 %v410, 65535
    %v441 = vshrl.u32 %v410, 16
    %v442 = vmul.u32 %v438, %v440
    %v443 = vmul.u32 %v438, %v441
    %v444 = vmul.u32 %v439, %v440
    %v445 = vmul.u32 %v439, %v441
    %v446 = vshll.u32 %v443, 16
    %v447 = vshrl.u32 %v443, 16
    %v448 = vshll.u32 %v444, 16
    %v449 = vshrl.u32 %v444, 16
    %vm450 = vc.u32 %v442, %v446
    %v451 = vsel %vm450, 1, 0
    %v452 = vadd.s32 %v442, %v446
    %v453 = vadd.s32 %v445, %v451
    %vm454 = vc.u32 %v452, %v448
    %v455 = vsel %vm454, 1, 0
    %v456 = vadd.s32 %v452, %v448
    %v457 = vadd.s32 %v453, %v455
    %v458 = vadd.s32 %v457, %v447
    %v459 = vadd.s32 %v458, %v449
    %v460 = vmul.u32 %v415, %v406
    %v461 = vadd.s32 %v437, %v456
    %vm462 = vc.u32 %v437, %v456
    %v463 = vadd.s32 %v459, 1
    %v464 = vsel %vm462, %v463, %v459
    %v465 = vadd.s32 %v460, %v464
    %v466 = vadd.s32 %v465, 536870912
    %v467 = vshrl.u32 %v466, 30
    %v468 = vshll.u32 %v467, 30
    %v469 = vsub.s32 %v465, %v468
    %vm470 = vcmp.lt.s32.totalorder %v469, 0
    %v471 = vsub.s32 0, %v469
    %v472 = vsel %vm470, %v471, %v469
    %v473 = vclz %v472
    %v474 = vsub.s32 %v473, 2
    %vm475 = vcmp.gt.s32.totalorder 0, %v474
    %v476 = vsel %vm475, 0, %v474
    %v477 = vsub.s32 32, %v476
    %v478 = vshll.u32 %v469, %v476
    %v479 = vshrl.u32 %v461, %v477
    %v480 = vor.u32 %v478, %v479
    %v481 = vsub.s32 4294967266, %v476
    %v482 = vadd.s32 %v481, 127
    %v483 = vshll.u32 %v482, 23
    %v484 = vor.u32 4788187, %v483
    %v485 = vand.u32 2147483647, %v484
    %v487 = vcvt.s32.f32 %v480
    %v488 = vmul.f32 %v487, %v485
    %v489 = vxor.u32 %v488, 2147483648
    %v490 = vsel %vm369, %v489, %v488
    %v491 = vsub.s32 4, %v467
    %v492 = vsel %vm369, %v491, %v467
    %v493 = vsel %vm368, %v57, %v490
    %v494 = vsel %vm368, 0, %v492
    %v495 = vmul.f32 %v493, %v493
    %v496 = vmul.f32 %v495, -0.001358992
    %v497 = vadd.f32 %v496, 0.041655596
    %v498 = vmul.f32 %v495, %v497
    %v499 = vadd.f32 %v498, -0.4999988
    %v500 = vmul.f32 %v495, %v499
    %v501 = vadd.f32 1.0, %v500
    %v502 = vmul.f32 %v493, %v493
    %v503 = vmul.f32 %v502, -0.00019511016
    %v504 = vadd.f32 %v503, 0.008332121
    %v505 = vmul.f32 %v502, %v504
    %v506 = vadd.f32 %v505, -0.16666654
    %v507 = vmul.f32 %v502, %v506
    %v508 = vadd.f32 %v507, 1.0
    %v509 = vmul.f32 %v508, %v493
    %vm510 = vweird.f32 %v57
    %v511 = vand.u32 %v494, 3
    %vm512 = vcmp.lt.s32.totalorder %v511, 2
    %vm513 = vcmp.eq.s32.totalorder %v511, 0
    %v514 = vxor.u32 %v509, 2147483648
    %v515 = vsel %vm513, %v501, %v514
    %vm516 = vcmp.eq.s32.totalorder %v511, 2
    %v517 = vxor.u32 %v501, 2147483648
    %v518 = vsel %vm516, %v517, %v509
    %v519 = vsel %vm512, %v515, %v518
    %v520 = vsel %vm510, nan, %v519
    %v521 = vand.u32 2147483647, %v57
    %vm522 = vcmp.le.f32.partialorder %v521, 0.7853982
    %vm523 = vcmp.lt.s32.totalorder %v57, 0
    %v524 = vand.u32 %v57, 2139095040
    %v525 = vshrl.u32 %v524, 23
    %v526 = vsub.s32 %v525, 127
    %v527 = vand.u32 2147483647, %v57
    %v528 = vand.u32 %v527, 8388607
    %v529 = vor.u32 %v528, 8388608
    %v530 = vsub.s32 0, %v529
    %v531 = vadd.s32 %v526, 1
    %vm532 = vcmp.gt.s32.totalorder %v531, 0
    %v533 = vsel %vm532, %v531, 0
    %v534 = vshrl.u32 %v533, 5
    %v535 = vand.u32 %v533, 31
    %v536 = vsub.s32 32, %v535
    %v537 = vshrl.u32 683565275, %v536
    %v538 = vshll.u32 683565275, %v535
    %v539 = vshrl.u32 2475754826, %v536
    %v540 = vor.u32 %v538, %v539
    %v541 = vshll.u32 2475754826, %v535
    %v542 = vshrl.u32 2131351028, %v536
    %v543 = vor.u32 %v541, %v542
    %v544 = vshll.u32 2131351028, %v535
    %v545 = vshrl.u32 2102212464, %v536
    %v546 = vor.u32 %v544, %v545
    %v547 = vshll.u32 2102212464, %v535
    %v548 = vshrl.u32 920167782, %v536
    %v549 = vor.u32 %v547, %v548
    %v550 = vshll.u32 920167782, %v535
    %v551 = vshrl.u32 1326507024, %v536
    %v552 = vor.u32 %v550, %v551
    %vm553 = vcmp.lt.s32.totalorder %v534, 1
    %vm554 = vcmp.lt.s32.totalorder %v534, 2
    %vm555 = vcmp.lt.s32.totalorder %v534, 3
    %vm556 = vcmp.lt.s32.totalorder %v534, 4
    %v557 = vsel %vm553, %v537, %v540
    %v558 = vsel %vm556, %v546, 2102212464
    %v559 = vsel %vm555, %v543, %v558
    %v560 = vsel %vm554, %v557, %v559
    %v561 = vsel %vm553, %v540, %v543
    %v562 = vsel %vm556, %v549, 920167782
    %v563 = vsel %vm555, %v546, %v562
    %v564 = vsel %vm554, %v561, %v563
    %v565 = vsel %vm553, %v543, %v546
    %v566 = vsel %vm556, %v552, 1326507024
    %v567 = vsel %vm555, %v549, %v566
    %v568 = vsel %vm554, %v565, %v567
    %v569 = vshll.u32 %v529, 8
    %v570 = vand.u32 %v569, 65535
    %v571 = vshrl.u32 %v569, 16
    %v572 = vand.u32 %v568, 65535
    %v573 = vshrl.u32 %v568, 16
    %v574 = vmul.u32 %v570, %v572
    %v575 = vmul.u32 %v570, %v573
    %v576 = vmul.u32 %v571, %v572
    %v577 = vmul.u32 %v571, %v573
    %v578 = vshll.u32 %v575, 16
    %v579 = vshrl.u32 %v575, 16
    %v580 = vshll.u32 %v576, 16
    %v581 = vshrl.u32 %v576, 16
    %vm582 = vc.u32 %v574, %v578
    %v583 = vsel %vm582, 1, 0
    %v584 = vadd.s32 %v574, %v578
    %v585 = vadd.s32 %v577, %v583
    %vm586 = vc.u32 %v584, %v580
    %v587 = vsel %vm586, 1, 0
    %v588 = vadd.s32 %v584, %v580
    %v589 = vadd.s32 %v585, %v587
    %v590 = vadd.s32 %v589, %v579
    %v591 = vadd.s32 %v590, %v581
    %v592 = vand.u32 %v569, 65535
    %v593 = vshrl.u32 %v569, 16
    %v594 = vand.u32 %v564, 65535
    %v595 = vshrl.u32 %v564, 16
    %v596 = vmul.u32 %v592, %v594
    %v597 = vmul.u32 %v592, %v595
    %v598 = vmul.u32 %v593, %v594
    %v599 = vmul.u32 %v593, %v595
    %v600 = vshll.u32 %v597, 16
    %v601 = vshrl.u32 %v597, 16
    %v602 = vshll.u32 %v598, 16
    %v603 = vshrl.u32 %v598, 16
    %vm604 = vc.u32 %v596, %v600
    %v605 = vsel %vm604, 1, 0
    %v606 = vadd.s32 %v596, %v600
    %v607 = vadd.s32 %v599, %v605
    %vm608 = vc.u32 %v606, %v602
    %v609 = vsel %vm608, 1, 0
    %v610 = vadd.s32 %v606, %v602
    %v611 = vadd.s32 %v607, %v609
    %v612 = vadd.s32 %v611, %v601
    %v613 = vadd.s32 %v612, %v603
    %v614 = vmul.u32 %v569, %v560
    %v615 = vadd.s32 %v591, %v610
    %vm616 = vc.u32 %v591, %v610
    %v617 = vadd.s32 %v613, 1
    %v618 = vsel %vm616, %v617, %v613
    %v619 = vadd.s32 %v614, %v618
    %v620 = vadd.s32 %v619, 536870912
    %v621 = vshrl.u32 %v620, 30
    %v622 = vshll.u32 %v621, 30
    %v623 = vsub.s32 %v619, %v622
    %vm624 = vcmp.lt.s32.totalorder %v623, 0
    %v625 = vsub.s32 0, %v623
    %v626 = vsel %vm624, %v625, %v623
    %v627 = vclz %v626
    %v628 = vsub.s32 %v627, 2
    %vm629 = vcmp.gt.s32.totalorder 0, %v628
    %v630 = vsel %vm629, 0, %v628
    %v631 = vsub.s32 32, %v630
    %v632 = vshll.u32 %v623, %v630
    %v633 = vshrl.u32 %v615, %v631
    %v634 = vor.u32 %v632, %v633
    %v635 = vsub.s32 4294967266, %v630
    %v636 = vadd.s32 %v635, 127
    %v637 = vshll.u32 %v636, 23
    %v638 = vor.u32 4788187, %v637
    %v639 = vand.u32 2147483647, %v638
    %v641 = vcvt.s32.f32 %v634
    %v642 = vmul.f32 %v641, %v639
    %v643 = vxor.u32 %v642, 2147483648
    %v644 = vsel %vm523, %v643, %v642
    %v645 = vsub.s32 4, %v621
    %v646 = vsel %vm523, %v645, %v621
    %v647 = vsel %vm522, %v57, %v644
    %v648 = vsel %vm522, 0, %v646
    %v649 = vmul.f32 %v647, %v647
    %v650 = vmul.f32 %v649, -0.001358992
    %v651 = vadd.f32 %v650, 0.041655596
    %v652 = vmul.f32 %v649, %v651
    %v653 = vadd.f32 %v652, -0.4999988
    %v654 = vmul.f32 %v649, %v653
    %v655 = vadd.f32 1.0, %v654
    %v656 = vmul.f32 %v647, %v647
    %v657 = vmul.f32 %v656, -0.00019511016
    %v658 = vadd.f32 %v657, 0.008332121
    %v659 = vmul.f32 %v656, %v658
    %v660 = vadd.f32 %v659, -0.16666654
    %v661 = vmul.f32 %v656, %v660
    %v662 = vadd.f32 %v661, 1.0
    %v663 = vmul.f32 %v662, %v647
    %vm664 = vweird.f32 %v57
    %v665 = vadd.s32 %v648, 3
    %v666 = vand.u32 %v665, 3
    %vm667 = vcmp.lt.s32.totalorder %v666, 2
    %vm668 = vcmp.eq.s32.totalorder %v666, 0
    %v669 = vxor.u32 %v663, 2147483648
    %v670 = vsel %vm668, %v655, %v669
    %vm671 = vcmp.eq.s32.totalorder %v666, 2
    %v672 = vxor.u32 %v655, 2147483648
    %v673 = vsel %vm671, %v672, %v663
    %v674 = vsel %vm667, %v670, %v673
    %v675 = vsel %vm664, nan, %v674
    %s676 = sld [smem:[#allocation2]]
    %s677 = smul.f32 %s676, 0.2820948
    %v678 = vstv %s677
    %v679 = vadd.f32 %v678, 0.0
    %s680 = sld [smem:[#allocation2 + $0x2]]
    %s681 = smul.f32 %s680, 0.48860252
    %v682 = vstv %s681
    %v683 = vmul.f32 %v211, %v682
    %v684 = vadd.f32 %v679, %v683
    %v685 = vmul.f32 %v211, 1.5
    %v686 = vmul.f32 %v685, %v211
    %v687 = vsub.f32 %v686, 0.5
    %s688 = sld [smem:[#allocation2 + $0x6]]
    %s689 = smul.f32 %s688, 0.63078314
    %v690 = vstv %s689
    %v691 = vmul.f32 %v687, %v690
    %v692 = vadd.f32 %v684, %v691
    %v693 = vmul.f32 %v211, 1.6666666
    %v694 = vmul.f32 %v693, %v687
    %v695 = vmul.f32 %v211, 0.6666667
    %v696 = vsub.f32 %v694, %v695
    %s697 = sld [smem:[#allocation2 + $0xc]]
    %s698 = smul.f32 %s697, 0.7463527
    %v699 = vstv %s698
    %v700 = vmul.f32 %v696, %v699
    %v701 = vadd.f32 %v692, %v700
    %v702 = vmul.f32 %v366, -1.0
    %v703 = vmul.f32 %v675, 0.0
    %v704 = vsub.f32 %v520, %v703
    %v705 = vmul.f32 %v520, 0.0
    %v706 = vadd.f32 %v705, %v675
    %s707 = sld [smem:[#allocation2 + $0x3]]
    %s708 = smul.f32 %s707, 0.48860252
    %v709 = vstv %s708
    %v710 = vmul.f32 %v704, %v709
    %s711 = sld [smem:[#allocation2 + $0x1]]
    %s712 = smul.f32 %s711, 0.48860252
    %v713 = vstv %s712
    %v714 = vmul.f32 %v706, %v713
    %v715 = vadd.f32 %v710, %v714
    %v716 = vmul.f32 %v702, %v715
    %v717 = vadd.f32 %v701, %v716
    %v718 = vmul.f32 %v211, 3.0
    %v719 = vmul.f32 %v718, %v702
    %s720 = sld [smem:[#allocation2 + $0x7]]
    %s721 = smul.f32 %s720, 0.3641828
    %v722 = vstv %s721
    %v723 = vmul.f32 %v704, %v722
    %s724 = sld [smem:[#allocation2 + $0x5]]
    %s725 = smul.f32 %s724, 0.3641828
    %v726 = vstv %s725
    %v727 = vmul.f32 %v706, %v726
    %v728 = vadd.f32 %v723, %v727
    %v729 = vmul.f32 %v719, %v728
    %v730 = vadd.f32 %v717, %v729
    %v731 = vmul.f32 %v211, 2.5
    %v732 = vmul.f32 %v731, %v719
    %v733 = vmul.f32 %v702, 1.5
    %v734 = vsub.f32 %v732, %v733
    %s735 = sld [smem:[#allocation2 + $0xd]]
    %s736 = smul.f32 %s735, 0.3046972
    %v737 = vstv %s736
    %v738 = vmul.f32 %v704, %v737
    %s739 = sld [smem:[#allocation2 + $0xb]]
    %s740 = smul.f32 %s739, 0.3046972
    %v741 = vstv %s740
    %v742 = vmul.f32 %v706, %v741
    %v743 = vadd.f32 %v738, %v742
    %v744 = vmul.f32 %v734, %v743
    %v745 = vadd.f32 %v730, %v744
    %v746 = vmul.f32 %v702, -3.0
    %v747 = vmul.f32 %v746, %v366
    %v748 = vmul.f32 %v704, %v520
    %v749 = vmul.f32 %v706, %v675
    %v750 = vsub.f32 %v748, %v749
    %v751 = vmul.f32 %v706, %v520
    %v752 = vmul.f32 %v704, %v675
    %v753 = vadd.f32 %v751, %v752
    %s754 = sld [smem:[#allocation2 + $0x8]]
    %s755 = smul.f32 %s754, 0.1820914
    %v756 = vstv %s755
    %v757 = vmul.f32 %v750, %v756
    %s758 = sld [smem:[#allocation2 + $0x4]]
    %s759 = smul.f32 %s758, 0.1820914
    %v760 = vstv %s759
    %v761 = vmul.f32 %v753, %v760
    %v762 = vadd.f32 %v757, %v761
    %v763 = vmul.f32 %v747, %v762
    %v764 = vadd.f32 %v745, %v763
    %v765 = vmul.f32 %v211, 5.0
    %v766 = vmul.f32 %v765, %v747
    %s767 = sld [smem:[#allocation2 + $0xe]]
    %s768 = smul.f32 %s767, 0.09635372
    %v769 = vstv %s768
    %v770 = vmul.f32 %v750, %v769
    %s771 = sld [smem:[#allocation2 + $0xa]]
    %s772 = smul.f32 %s771, 0.09635372
    %v773 = vstv %s772
    %v774 = vmul.f32 %v753, %v773
    %v775 = vadd.f32 %v770, %v774
    %v776 = vmul.f32 %v766, %v775
    %v777 = vadd.f32 %v764, %v776
    %v778 = vmul.f32 %v747, -5.0
    %v779 = vmul.f32 %v778, %v366
    %v780 = vmul.f32 %v750, %v520
    %v781 = vmul.f32 %v753, %v675
    %v782 = vsub.f32 %v780, %v781
    %v783 = vmul.f32 %v753, %v520
    %v784 = vmul.f32 %v750, %v675
    %v785 = vadd.f32 %v783, %v784
    %s786 = sld [smem:[#allocation2 + $0xf]]
    %s787 = smul.f32 %s786, 0.039336238
    %v788 = vstv %s787
    %v789 = vmul.f32 %v782, %v788
    %s790 = sld [smem:[#allocation2 + $0x9]]
    %s791 = smul.f32 %s790, 0.039336238
    %v792 = vstv %s791
    %v793 = vmul.f32 %v785, %v792
    %v794 = vadd.f32 %v789, %v793
    %v795 = vmul.f32 %v779, %v794
    %v796 = vadd.f32 %v777, %v795
    %v797 = vtanh.pop %v796
    %798 = vst [vmem:[#allocation9] sm:$0xff] %v797
    // Predicated region
    $region26: #{tpu_custom_call.1} parent=1 // pred_check
      _
    $region27: #{tpu_custom_call.1} parent=1 // pred_check_branch
      %800 = sbr.rel (0) target = $region29
    $region28: #{tpu_custom_call.1} parent=1 // pred_region
      %802 = vsyncadd [#allocation4], 0
      %s804 = sshll.u32 [#allocation9], 4
      %s805 = int_to_ptr.vmem [resolvable:$true] %s804
      %s806 = sshll.u32 %s3, 4
      %s807 = int_to_ptr.hbm [resolvable:$true] %s806
      %809 = dma.vmem_to_hbm [thread:$0]  %s805, 128, %s807, [#allocation4]
    $region29: #{tpu_custom_call.1} parent=1 // pred_fallthru
      _
    // Predicated region
    $region30: #{tpu_custom_call.1} parent=1 // pred_check
      _
    $region31: #{tpu_custom_call.1} parent=1 // pred_check_branch
      %811 = sbr.rel (0) target = $region33
    $region32: #{tpu_custom_call.1} parent=1 // pred_region
      %813 = dma.done [#allocation4], 128
    $region33: #{tpu_custom_call.1} parent=1 // pred_fallthru
      _
    %814 = vsyncpa [#allocation3], 1
    %815 = vsyncpa [#allocation8], 1
    %816 = vsyncpa [#allocation4], 1
    %817 = vsyncpa [#allocation5], 1

</llo_original>
